<compile_context>
chip_gen: v5e
topology: v5e:2x2
jax: 0.10.0
libtpu: 0.0.40
codegen_flags: <defaults>
</compile_context>

<pallas_src>
import functools

import jax
import jax.numpy as jnp
from jax import lax
from jax.experimental import pallas as pl
from jax.experimental.pallas import tpu as pltpu


def _round_up(v, m):
    return ((v + m - 1) // m) * m


# --------------------------------------------------------------------------
# Kernel: one (batch, spatial-chunk) grid step.
# --------------------------------------------------------------------------
def upblock2d_kernel(x_ref, w_ref, bias_ref, o_ref, xs_ref, *, cin, wpx, tl):
    """
    x_ref:    (Cin, CHUNK)         bf16  halo'd chunk of the zero-padded, row-
                                         flattened ORIGINAL-resolution input
    w_ref:    (4, 2, Cout, 2*Cin)  bf16  per-parity effective 2x2 taps
                                         (BN scale already folded in)
    bias_ref: (Cout, 1)            f32   folded conv-bias + BN shift
    o_ref:    (4, Cout, TL)        f32   the 4 parity output planes, this chunk
    xs_ref:   (9*Cin, TL)          bf16  scratch: stacked (im2col) shifted views
    """
    # Pack the 9 shifted views once.  Tap k = ry*3 + rx lives at rows
    # [k*Cin, (k+1)*Cin) and is the input shifted by ry*Wpx + rx lanes.
    for ry in range(3):
        for rx in range(3):
            k = ry * 3 + rx
            off = ry * wpx + rx
            xs_ref[k * cin:(k + 1) * cin, :] = x_ref[:, off:off + tl]

    bias = bias_ref[...]                                   # (Cout, 1) f32

    # Each parity (py, px) is an exact 2x2 conv over the original grid: its 4
    # taps are two contiguous pairs of scratch blocks -> 2 matmuls with
    # K = 2*Cin, accumulated in f32; bias + ReLU epilogue stays in f32.
    for p in range(4):
        py, px = p // 2, p % 2
        k_top = 3 * py + px            # taps (ry=py,   rx=px) , (ry=py,   rx=px+1)
        k_bot = k_top + 3              # taps (ry=py+1, rx=px) , (ry=py+1, rx=px+1)
        acc = jnp.dot(w_ref[p, 0], xs_ref[k_top * cin:(k_top + 2) * cin, :],
                      preferred_element_type=jnp.float32)
        acc = acc + jnp.dot(w_ref[p, 1], xs_ref[k_bot * cin:(k_bot + 2) * cin, :],
                            preferred_element_type=jnp.float32)
        o_ref[p] = jnp.maximum(acc + bias, 0.0).astype(o_ref.dtype)


# --------------------------------------------------------------------------
# Wrapper
# --------------------------------------------------------------------------
def upblock2d_forward(x, w, b, gamma, beta, running_mean, running_var,
                      eps=1e-5, tl_target=4096):
    B, Cin, H, W = x.shape
    Cout = w.shape[0]

    # Padded row width on the ORIGINAL grid: >= W + 2 (one zero column each side
    # of the data for the conv padding).  If wide enough, round to a multiple of
    # 128 so the ry*Wpx row shifts are lane-aligned; otherwise smallest width
    # making H*Wpx a multiple of 128 (unmasked lane-dense output stores).
    Wpx = W + 2
    if Wpx >= 128:
        Wpx = _round_up(Wpx, 128)
    while (H * Wpx) % 128 != 0:
        Wpx += 1
    L_p = H * Wpx                       # flattened output length per parity/channel

    # Spatial tile: largest multiple of 128 dividing L_p, capped (~generation
    # sized) so the double-buffered blocks stay well inside v7x's 64 MiB VMEM.
    tl = max(128, min(L_p, (tl_target // 128) * 128))
    while tl > 128 and L_p % tl != 0:
        tl -= 128
    n_l = L_p // tl

    max_off = 2 * Wpx + 2               # largest tap shift (ry=2, rx=2)
    chunk = _round_up(tl + max_off, 128)
    L_in = (n_l - 1) * tl + chunk       # flattened input length incl. halo/tail

    # ---- input layout prep at ORIGINAL resolution (no 4x upsampled HBM copy) --
    x_pad = jnp.pad(x, ((0, 0), (0, 0), (1, 1), (1, Wpx - 1 - W)))
    x_flat = x_pad.reshape(B, Cin, (H + 2) * Wpx)
    x_flat = jnp.pad(x_flat, ((0, 0), (0, 0), (0, L_in - (H + 2) * Wpx)))
    x_flat = x_flat.astype(jnp.bfloat16)
    # Pre-chunk with halos so the BlockSpec pipelines input DMAs and the kernel
    # only ever uses static, in-bounds slices (halo overhead ~ max_off/TL).
    x_chunks = jnp.stack(
        [x_flat[:, :, j * tl:j * tl + chunk] for j in range(n_l)], axis=1)

    # ---- per-parity effective 2x2 weights (nearest-x2 folded into the conv) ---
    # ksets[(parity, r)] = original 3-tap indices that collapse onto relative tap
    # r (r in {parity, parity+1}) for that output parity.
    ksets = {(0, 0): (0,), (0, 1): (1, 2), (1, 1): (0, 1), (1, 2): (2,)}
    wf = w.astype(jnp.float32)

    def eff_tap(py, px, ry, rx):
        acc = None
        for ky in ksets[(py, ry)]:
            for kx in ksets[(px, rx)]:
                t = wf[:, :, ky, kx]
                acc = t if acc is None else acc + t
        return acc                                            # (Cout, Cin)

    inv_std = (gamma / jnp.sqrt(running_var + eps)).astype(jnp.float32)
    blocks = []
    for py in range(2):
        for px in range(2):
            top = jnp.concatenate(
                [eff_tap(py, px, py, px), eff_tap(py, px, py, px + 1)], axis=1)
            bot = jnp.concatenate(
                [eff_tap(py, px, py + 1, px), eff_tap(py, px, py + 1, px + 1)], axis=1)
            blocks.append(jnp.stack([top, bot]))              # (2, Cout, 2*Cin)
    w_pp = jnp.stack(blocks)                                  # (4, 2, Cout, 2*Cin)
    w_pp = (w_pp * inv_std[None, None, :, None]).astype(jnp.bfloat16)  # fold BN scale

    eff_bias = ((b - running_mean) * inv_std + beta).reshape(Cout, 1)
    eff_bias = eff_bias.astype(jnp.float32)

    kernel = functools.partial(upblock2d_kernel, cin=Cin, wpx=Wpx, tl=tl)

    # Per-step VMEM footprint -> scoped limit derived from the block footprint
    # (capped so the same code still double-buffers on v7x's 64 MiB VMEM).
    blk_bytes = (2 * Cin * chunk * 2                 # input chunk, double-buffered
                 + w_pp.size * 2 + Cout * 4          # weights + bias (resident)
                 + 2 * 4 * Cout * tl * 4             # output block, double-buffered
                 + 9 * Cin * tl * 2)                 # stacked-RHS scratch
    vmem_limit = int(min(56 * 2**20, max(32 * 2**20, 4 * blk_bytes)))

    flops = 2 * B * 4 * Cout * (4 * Cin) * L_p
    bytes_accessed = int(x_chunks.size * 2 + w_pp.size * 2 + eff_bias.size * 4
                         + B * 4 * Cout * L_p * 4)

    y4 = pl.pallas_call(
        kernel,
        out_shape=jax.ShapeDtypeStruct((B, 4, Cout, L_p), jnp.float32),
        grid_spec=pltpu.PrefetchScalarGridSpec(
            num_scalar_prefetch=0,
            grid=(B, n_l),
            in_specs=[
                pl.BlockSpec((None, None, Cin, chunk),
                             lambda bb, jj: (bb, jj, 0, 0)),            # x chunks
                pl.BlockSpec((4, 2, Cout, 2 * Cin),
                             lambda bb, jj: (0, 0, 0, 0)),              # parity taps
                pl.BlockSpec((Cout, 1), lambda bb, jj: (0, 0)),         # folded bias
            ],
            out_specs=pl.BlockSpec((None, 4, Cout, tl),
                                   lambda bb, jj: (bb, 0, 0, jj)),
            scratch_shapes=[pltpu.VMEM((9 * Cin, tl), jnp.bfloat16)],
        ),
        compiler_params=pltpu.CompilerParams(
            dimension_semantics=("parallel", "parallel"),
            vmem_limit_bytes=vmem_limit,
        ),
        cost_estimate=pl.CostEstimate(
            flops=flops, transcendentals=0, bytes_accessed=bytes_accessed),
    )(x_chunks, w_pp, eff_bias)

    # Parity planes -> NCHW pixel shuffle + de-pad (one fused XLA transpose copy;
    # a fused downstream consumer could take the padded parity layout directly).
    y = y4.reshape(B, 2, 2, Cout, H, Wpx)[:, :, :, :, :, :W]
    y = jnp.transpose(y, (0, 3, 4, 1, 5, 2)).reshape(B, Cout, 2 * H, 2 * W)
    return y


# --------------------------------------------------------------------------
# Pure-JAX reference (direct port of the PyTorch forward, eval-mode BN)
# --------------------------------------------------------------------------
def reference_forward(x, w, b, gamma, beta, running_mean, running_var, eps=1e-5):
    x_up = jnp.repeat(jnp.repeat(x, 2, axis=2), 2, axis=3)
    y = lax.conv_general_dilated(
        x_up, w, window_strides=(1, 1), padding=((1, 1), (1, 1)),
        dimension_numbers=("NCHW", "OIHW", "NCHW"),
        precision=lax.Precision.HIGHEST)
    y = y + b[None, :, None, None]
    inv_std = gamma / jnp.sqrt(running_var + eps)
    y = (y - running_mean[None, :, None, None]) * inv_std[None, :, None, None] \
        + beta[None, :, None, None]
    return jnp.maximum(y, 0.0)


if __name__ == "__main__":
    B, Cin, Cout, H, W = 2, 4, 8, 16, 16

    key = jax.random.PRNGKey(0)
    keys = jax.random.split(key, 7)
    x = jax.random.normal(keys[0], (B, Cin, H, W), jnp.float32)
    w = jax.random.normal(keys[1], (Cout, Cin, 3, 3), jnp.float32) * 0.2
    b = jax.random.normal(keys[2], (Cout,), jnp.float32) * 0.1
    gamma = 1.0 + 0.2 * jax.random.normal(keys[3], (Cout,), jnp.float32)
    beta = 0.1 * jax.random.normal(keys[4], (Cout,), jnp.float32)
    running_mean = 0.1 * jax.random.normal(keys[5], (Cout,), jnp.float32)
    running_var = jax.nn.softplus(jax.random.normal(keys[6], (Cout,), jnp.float32)) + 0.5

    params = (w, b, gamma, beta, running_mean, running_var)

    fwd = jax.jit(lambda xx: upblock2d_forward(xx, *params))
    out = jax.block_until_ready(fwd(x))

    ref = reference_forward(x, *params)
    assert out.shape == (B, Cout, 2 * H, 2 * W), out.shape
    max_err = float(jnp.max(jnp.abs(out - ref)))
    # bf16 operands -> ~1e-2-scale rounding vs the all-f32 reference.
    if max_err > 6e-2:
        raise AssertionError(f"kernel/reference mismatch: max_err={max_err}")

    print("KERNEL_OK")
</pallas_src>

<mosaic_0001>
module attributes {stable_mosaic.version = 11 : i64} {
  func.func @upblock2d_kernel(%arg0: i32, %arg1: i32, %arg2: memref<1x1x4x512xbf16, #tpu.memory_space<vmem>>, %arg3: memref<4x2x8x8xbf16, #tpu.memory_space<vmem>>, %arg4: memref<8x1xf32, #tpu.memory_space<vmem>>, %arg5: memref<1x4x8x384xf32, #tpu.memory_space<vmem>>, %arg6: memref<36x384xbf16, #tpu.memory_space<vmem>>) attributes {dimension_semantics = [#tpu.dimension_semantics<parallel>, #tpu.dimension_semantics<parallel>], iteration_bounds = array<i64: 2, 1>, scalar_prefetch = 0 : i64, scratch_operands = 1 : i64, tpu.core_type = #tpu.core_type<tc>, window_params = [{transform_indices = @transform_0, window_bounds = array<i64: 1, 1, 4, 512>}, {pipeline_mode = #tpu.pipeline_mode<synchronous>, transform_indices = @transform_1, window_bounds = array<i64: 4, 2, 8, 8>}, {pipeline_mode = #tpu.pipeline_mode<synchronous>, transform_indices = @transform_2, window_bounds = array<i64: 8, 1>}, {transform_indices = @transform_3, window_bounds = array<i64: 1, 4, 8, 384>}]} {
    %c0 = arith.constant 0 : index
    %c0_0 = arith.constant 0 : index
    %c0_1 = arith.constant 0 : index
    %c0_2 = arith.constant 0 : index
    %0 = vector.load %arg2[%c0, %c0_0, %c0_1, %c0_2] : memref<1x1x4x512xbf16, #tpu.memory_space<vmem>>, vector<1x1x4x384xbf16>
    %1 = vector.shape_cast %0 : vector<1x1x4x384xbf16> to vector<4x384xbf16>
    %c0_3 = arith.constant 0 : index
    %c0_4 = arith.constant 0 : index
    %2 = vector.load %arg6[%c0_3, %c0_4] : memref<36x384xbf16, #tpu.memory_space<vmem>>, vector<4x384xbf16>
    tpu.vector_store %arg6[%c0_3, %c0_4], %1 {strides = array<i32>} : memref<36x384xbf16, #tpu.memory_space<vmem>>, vector<4x384xbf16>,
    %c0_5 = arith.constant 0 : index
    %c0_6 = arith.constant 0 : index
    %c0_7 = arith.constant 0 : index
    %c1 = arith.constant 1 : index
    %3 = vector.load %arg2[%c0_5, %c0_6, %c0_7, %c1] : memref<1x1x4x512xbf16, #tpu.memory_space<vmem>>, vector<1x1x4x384xbf16>
    %4 = vector.shape_cast %3 : vector<1x1x4x384xbf16> to vector<4x384xbf16>
    %c4 = arith.constant 4 : index
    %c0_8 = arith.constant 0 : index
    %5 = vector.load %arg6[%c4, %c0_8] : memref<36x384xbf16, #tpu.memory_space<vmem>>, vector<4x384xbf16>
    tpu.vector_store %arg6[%c4, %c0_8], %4 {strides = array<i32>} : memref<36x384xbf16, #tpu.memory_space<vmem>>, vector<4x384xbf16>,
    %c0_9 = arith.constant 0 : index
    %c0_10 = arith.constant 0 : index
    %c0_11 = arith.constant 0 : index
    %c2 = arith.constant 2 : index
    %6 = vector.load %arg2[%c0_9, %c0_10, %c0_11, %c2] : memref<1x1x4x512xbf16, #tpu.memory_space<vmem>>, vector<1x1x4x384xbf16>
    %7 = vector.shape_cast %6 : vector<1x1x4x384xbf16> to vector<4x384xbf16>
    %c8 = arith.constant 8 : index
    %c0_12 = arith.constant 0 : index
    %8 = vector.load %arg6[%c8, %c0_12] : memref<36x384xbf16, #tpu.memory_space<vmem>>, vector<4x384xbf16>
    tpu.vector_store %arg6[%c8, %c0_12], %7 {strides = array<i32>} : memref<36x384xbf16, #tpu.memory_space<vmem>>, vector<4x384xbf16>,
    %c0_13 = arith.constant 0 : index
    %c0_14 = arith.constant 0 : index
    %c0_15 = arith.constant 0 : index
    %c24 = arith.constant 24 : index
    %9 = vector.load %arg2[%c0_13, %c0_14, %c0_15, %c24] : memref<1x1x4x512xbf16, #tpu.memory_space<vmem>>, vector<1x1x4x384xbf16>
    %10 = vector.shape_cast %9 : vector<1x1x4x384xbf16> to vector<4x384xbf16>
    %c12 = arith.constant 12 : index
    %c0_16 = arith.constant 0 : index
    %11 = vector.load %arg6[%c12, %c0_16] : memref<36x384xbf16, #tpu.memory_space<vmem>>, vector<4x384xbf16>
    tpu.vector_store %arg6[%c12, %c0_16], %10 {strides = array<i32>} : memref<36x384xbf16, #tpu.memory_space<vmem>>, vector<4x384xbf16>,
    %c0_17 = arith.constant 0 : index
    %c0_18 = arith.constant 0 : index
    %c0_19 = arith.constant 0 : index
    %c25 = arith.constant 25 : index
    %12 = vector.load %arg2[%c0_17, %c0_18, %c0_19, %c25] : memref<1x1x4x512xbf16, #tpu.memory_space<vmem>>, vector<1x1x4x384xbf16>
    %13 = vector.shape_cast %12 : vector<1x1x4x384xbf16> to vector<4x384xbf16>
    %c16 = arith.constant 16 : index
    %c0_20 = arith.constant 0 : index
    %14 = vector.load %arg6[%c16, %c0_20] : memref<36x384xbf16, #tpu.memory_space<vmem>>, vector<4x384xbf16>
    tpu.vector_store %arg6[%c16, %c0_20], %13 {strides = array<i32>} : memref<36x384xbf16, #tpu.memory_space<vmem>>, vector<4x384xbf16>,
    %c0_21 = arith.constant 0 : index
    %c0_22 = arith.constant 0 : index
    %c0_23 = arith.constant 0 : index
    %c26 = arith.constant 26 : index
    %15 = vector.load %arg2[%c0_21, %c0_22, %c0_23, %c26] : memref<1x1x4x512xbf16, #tpu.memory_space<vmem>>, vector<1x1x4x384xbf16>
    %16 = vector.shape_cast %15 : vector<1x1x4x384xbf16> to vector<4x384xbf16>
    %c20 = arith.constant 20 : index
    %c0_24 = arith.constant 0 : index
    %17 = vector.load %arg6[%c20, %c0_24] : memref<36x384xbf16, #tpu.memory_space<vmem>>, vector<4x384xbf16>
    tpu.vector_store %arg6[%c20, %c0_24], %16 {strides = array<i32>} : memref<36x384xbf16, #tpu.memory_space<vmem>>, vector<4x384xbf16>,
    %c0_25 = arith.constant 0 : index
    %c0_26 = arith.constant 0 : index
    %c0_27 = arith.constant 0 : index
    %c48 = arith.constant 48 : index
    %18 = vector.load %arg2[%c0_25, %c0_26, %c0_27, %c48] : memref<1x1x4x512xbf16, #tpu.memory_space<vmem>>, vector<1x1x4x384xbf16>
    %19 = vector.shape_cast %18 : vector<1x1x4x384xbf16> to vector<4x384xbf16>
    %c24_28 = arith.constant 24 : index
    %c0_29 = arith.constant 0 : index
    %20 = vector.load %arg6[%c24_28, %c0_29] : memref<36x384xbf16, #tpu.memory_space<vmem>>, vector<4x384xbf16>
    tpu.vector_store %arg6[%c24_28, %c0_29], %19 {strides = array<i32>} : memref<36x384xbf16, #tpu.memory_space<vmem>>, vector<4x384xbf16>,
    %c0_30 = arith.constant 0 : index
    %c0_31 = arith.constant 0 : index
    %c0_32 = arith.constant 0 : index
    %c49 = arith.constant 49 : index
    %21 = vector.load %arg2[%c0_30, %c0_31, %c0_32, %c49] : memref<1x1x4x512xbf16, #tpu.memory_space<vmem>>, vector<1x1x4x384xbf16>
    %22 = vector.shape_cast %21 : vector<1x1x4x384xbf16> to vector<4x384xbf16>
    %c28 = arith.constant 28 : index
    %c0_33 = arith.constant 0 : index
    %23 = vector.load %arg6[%c28, %c0_33] : memref<36x384xbf16, #tpu.memory_space<vmem>>, vector<4x384xbf16>
    tpu.vector_store %arg6[%c28, %c0_33], %22 {strides = array<i32>} : memref<36x384xbf16, #tpu.memory_space<vmem>>, vector<4x384xbf16>,
    %c0_34 = arith.constant 0 : index
    %c0_35 = arith.constant 0 : index
    %c0_36 = arith.constant 0 : index
    %c50 = arith.constant 50 : index
    %24 = vector.load %arg2[%c0_34, %c0_35, %c0_36, %c50] : memref<1x1x4x512xbf16, #tpu.memory_space<vmem>>, vector<1x1x4x384xbf16>
    %25 = vector.shape_cast %24 : vector<1x1x4x384xbf16> to vector<4x384xbf16>
    %c32 = arith.constant 32 : index
    %c0_37 = arith.constant 0 : index
    %26 = vector.load %arg6[%c32, %c0_37] : memref<36x384xbf16, #tpu.memory_space<vmem>>, vector<4x384xbf16>
    tpu.vector_store %arg6[%c32, %c0_37], %25 {strides = array<i32>} : memref<36x384xbf16, #tpu.memory_space<vmem>>, vector<4x384xbf16>,
    %c0_38 = arith.constant 0 : index
    %c0_39 = arith.constant 0 : index
    %27 = vector.load %arg4[%c0_38, %c0_39] : memref<8x1xf32, #tpu.memory_space<vmem>>, vector<8x1xf32>
    %c0_40 = arith.constant 0 : index
    %c0_41 = arith.constant 0 : index
    %c0_42 = arith.constant 0 : index
    %c0_43 = arith.constant 0 : index
    %28 = vector.load %arg3[%c0_40, %c0_41, %c0_42, %c0_43] : memref<4x2x8x8xbf16, #tpu.memory_space<vmem>>, vector<1x1x8x8xbf16>
    %29 = vector.shape_cast %28 : vector<1x1x8x8xbf16> to vector<8x8xbf16>
    %c0_44 = arith.constant 0 : index
    %c0_45 = arith.constant 0 : index
    %30 = vector.load %arg6[%c0_44, %c0_45] : memref<36x384xbf16, #tpu.memory_space<vmem>>, vector<8x384xbf16>
    %cst = arith.constant dense<0.000000e+00> : vector<8x384xf32>
    %31 = tpu.matmul %29, %30, %cst {dimension_numbers = #tpu.dot_dimension_numbers<[1], [0], [0], [1], [0, 0, 1, 1], [], []>} : vector<8x8xbf16>, vector<8x384xbf16>, vector<8x384xf32> -> vector<8x384xf32>
    %c0_46 = arith.constant 0 : index
    %c1_47 = arith.constant 1 : index
    %c0_48 = arith.constant 0 : index
    %c0_49 = arith.constant 0 : index
    %32 = vector.load %arg3[%c0_46, %c1_47, %c0_48, %c0_49] : memref<4x2x8x8xbf16, #tpu.memory_space<vmem>>, vector<1x1x8x8xbf16>
    %33 = vector.shape_cast %32 : vector<1x1x8x8xbf16> to vector<8x8xbf16>
    %c12_50 = arith.constant 12 : index
    %c0_51 = arith.constant 0 : index
    %34 = vector.load %arg6[%c12_50, %c0_51] : memref<36x384xbf16, #tpu.memory_space<vmem>>, vector<8x384xbf16>
    %cst_52 = arith.constant dense<0.000000e+00> : vector<8x384xf32>
    %35 = tpu.matmul %33, %34, %cst_52 {dimension_numbers = #tpu.dot_dimension_numbers<[1], [0], [0], [1], [0, 0, 1, 1], [], []>} : vector<8x8xbf16>, vector<8x384xbf16>, vector<8x384xf32> -> vector<8x384xf32>
    %36 = arith.addf %31, %35 : vector<8x384xf32>
    %37 = vector.broadcast %27 : vector<8x1xf32> to vector<8x384xf32>
    %38 = arith.addf %36, %37 : vector<8x384xf32>
    %cst_53 = arith.constant 0.000000e+00 : f32
    %39 = vector.broadcast %cst_53 : f32 to vector<8x384xf32>
    %40 = arith.maximumf %38, %39 : vector<8x384xf32>
    %c0_54 = arith.constant 0 : index
    %c0_55 = arith.constant 0 : index
    %c0_56 = arith.constant 0 : index
    %c0_57 = arith.constant 0 : index
    %41 = vector.load %arg5[%c0_54, %c0_55, %c0_56, %c0_57] : memref<1x4x8x384xf32, #tpu.memory_space<vmem>>, vector<1x1x8x384xf32>
    %42 = vector.shape_cast %41 : vector<1x1x8x384xf32> to vector<8x384xf32>
    %43 = vector.shape_cast %40 : vector<8x384xf32> to vector<1x1x8x384xf32>
    tpu.vector_store %arg5[%c0_54, %c0_55, %c0_56, %c0_57], %43 {strides = array<i32>} : memref<1x4x8x384xf32, #tpu.memory_space<vmem>>, vector<1x1x8x384xf32>,
    %c1_58 = arith.constant 1 : index
    %c0_59 = arith.constant 0 : index
    %c0_60 = arith.constant 0 : index
    %c0_61 = arith.constant 0 : index
    %44 = vector.load %arg3[%c1_58, %c0_59, %c0_60, %c0_61] : memref<4x2x8x8xbf16, #tpu.memory_space<vmem>>, vector<1x1x8x8xbf16>
    %45 = vector.shape_cast %44 : vector<1x1x8x8xbf16> to vector<8x8xbf16>
    %c4_62 = arith.constant 4 : index
    %c0_63 = arith.constant 0 : index
    %46 = vector.load %arg6[%c4_62, %c0_63] : memref<36x384xbf16, #tpu.memory_space<vmem>>, vector<8x384xbf16>
    %cst_64 = arith.constant dense<0.000000e+00> : vector<8x384xf32>
    %47 = tpu.matmul %45, %46, %cst_64 {dimension_numbers = #tpu.dot_dimension_numbers<[1], [0], [0], [1], [0, 0, 1, 1], [], []>} : vector<8x8xbf16>, vector<8x384xbf16>, vector<8x384xf32> -> vector<8x384xf32>
    %c1_65 = arith.constant 1 : index
    %c1_66 = arith.constant 1 : index
    %c0_67 = arith.constant 0 : index
    %c0_68 = arith.constant 0 : index
    %48 = vector.load %arg3[%c1_65, %c1_66, %c0_67, %c0_68] : memref<4x2x8x8xbf16, #tpu.memory_space<vmem>>, vector<1x1x8x8xbf16>
    %49 = vector.shape_cast %48 : vector<1x1x8x8xbf16> to vector<8x8xbf16>
    %c16_69 = arith.constant 16 : index
    %c0_70 = arith.constant 0 : index
    %50 = vector.load %arg6[%c16_69, %c0_70] : memref<36x384xbf16, #tpu.memory_space<vmem>>, vector<8x384xbf16>
    %cst_71 = arith.constant dense<0.000000e+00> : vector<8x384xf32>
    %51 = tpu.matmul %49, %50, %cst_71 {dimension_numbers = #tpu.dot_dimension_numbers<[1], [0], [0], [1], [0, 0, 1, 1], [], []>} : vector<8x8xbf16>, vector<8x384xbf16>, vector<8x384xf32> -> vector<8x384xf32>
    %52 = arith.addf %47, %51 : vector<8x384xf32>
    %53 = vector.broadcast %27 : vector<8x1xf32> to vector<8x384xf32>
    %54 = arith.addf %52, %53 : vector<8x384xf32>
    %cst_72 = arith.constant 0.000000e+00 : f32
    %55 = vector.broadcast %cst_72 : f32 to vector<8x384xf32>
    %56 = arith.maximumf %54, %55 : vector<8x384xf32>
    %c0_73 = arith.constant 0 : index
    %c1_74 = arith.constant 1 : index
    %c0_75 = arith.constant 0 : index
    %c0_76 = arith.constant 0 : index
    %57 = vector.load %arg5[%c0_73, %c1_74, %c0_75, %c0_76] : memref<1x4x8x384xf32, #tpu.memory_space<vmem>>, vector<1x1x8x384xf32>
    %58 = vector.shape_cast %57 : vector<1x1x8x384xf32> to vector<8x384xf32>
    %59 = vector.shape_cast %56 : vector<8x384xf32> to vector<1x1x8x384xf32>
    tpu.vector_store %arg5[%c0_73, %c1_74, %c0_75, %c0_76], %59 {strides = array<i32>} : memref<1x4x8x384xf32, #tpu.memory_space<vmem>>, vector<1x1x8x384xf32>,
    %c2_77 = arith.constant 2 : index
    %c0_78 = arith.constant 0 : index
    %c0_79 = arith.constant 0 : index
    %c0_80 = arith.constant 0 : index
    %60 = vector.load %arg3[%c2_77, %c0_78, %c0_79, %c0_80] : memref<4x2x8x8xbf16, #tpu.memory_space<vmem>>, vector<1x1x8x8xbf16>
    %61 = vector.shape_cast %60 : vector<1x1x8x8xbf16> to vector<8x8xbf16>
    %c12_81 = arith.constant 12 : index
    %c0_82 = arith.constant 0 : index
    %62 = vector.load %arg6[%c12_81, %c0_82] : memref<36x384xbf16, #tpu.memory_space<vmem>>, vector<8x384xbf16>
    %cst_83 = arith.constant dense<0.000000e+00> : vector<8x384xf32>
    %63 = tpu.matmul %61, %62, %cst_83 {dimension_numbers = #tpu.dot_dimension_numbers<[1], [0], [0], [1], [0, 0, 1, 1], [], []>} : vector<8x8xbf16>, vector<8x384xbf16>, vector<8x384xf32> -> vector<8x384xf32>
    %c2_84 = arith.constant 2 : index
    %c1_85 = arith.constant 1 : index
    %c0_86 = arith.constant 0 : index
    %c0_87 = arith.constant 0 : index
    %64 = vector.load %arg3[%c2_84, %c1_85, %c0_86, %c0_87] : memref<4x2x8x8xbf16, #tpu.memory_space<vmem>>, vector<1x1x8x8xbf16>
    %65 = vector.shape_cast %64 : vector<1x1x8x8xbf16> to vector<8x8xbf16>
    %c24_88 = arith.constant 24 : index
    %c0_89 = arith.constant 0 : index
    %66 = vector.load %arg6[%c24_88, %c0_89] : memref<36x384xbf16, #tpu.memory_space<vmem>>, vector<8x384xbf16>
    %cst_90 = arith.constant dense<0.000000e+00> : vector<8x384xf32>
    %67 = tpu.matmul %65, %66, %cst_90 {dimension_numbers = #tpu.dot_dimension_numbers<[1], [0], [0], [1], [0, 0, 1, 1], [], []>} : vector<8x8xbf16>, vector<8x384xbf16>, vector<8x384xf32> -> vector<8x384xf32>
    %68 = arith.addf %63, %67 : vector<8x384xf32>
    %69 = vector.broadcast %27 : vector<8x1xf32> to vector<8x384xf32>
    %70 = arith.addf %68, %69 : vector<8x384xf32>
    %cst_91 = arith.constant 0.000000e+00 : f32
    %71 = vector.broadcast %cst_91 : f32 to vector<8x384xf32>
    %72 = arith.maximumf %70, %71 : vector<8x384xf32>
    %c0_92 = arith.constant 0 : index
    %c2_93 = arith.constant 2 : index
    %c0_94 = arith.constant 0 : index
    %c0_95 = arith.constant 0 : index
    %73 = vector.load %arg5[%c0_92, %c2_93, %c0_94, %c0_95] : memref<1x4x8x384xf32, #tpu.memory_space<vmem>>, vector<1x1x8x384xf32>
    %74 = vector.shape_cast %73 : vector<1x1x8x384xf32> to vector<8x384xf32>
    %75 = vector.shape_cast %72 : vector<8x384xf32> to vector<1x1x8x384xf32>
    tpu.vector_store %arg5[%c0_92, %c2_93, %c0_94, %c0_95], %75 {strides = array<i32>} : memref<1x4x8x384xf32, #tpu.memory_space<vmem>>, vector<1x1x8x384xf32>,
    %c3 = arith.constant 3 : index
    %c0_96 = arith.constant 0 : index
    %c0_97 = arith.constant 0 : index
    %c0_98 = arith.constant 0 : index
    %76 = vector.load %arg3[%c3, %c0_96, %c0_97, %c0_98] : memref<4x2x8x8xbf16, #tpu.memory_space<vmem>>, vector<1x1x8x8xbf16>
    %77 = vector.shape_cast %76 : vector<1x1x8x8xbf16> to vector<8x8xbf16>
    %c16_99 = arith.constant 16 : index
    %c0_100 = arith.constant 0 : index
    %78 = vector.load %arg6[%c16_99, %c0_100] : memref<36x384xbf16, #tpu.memory_space<vmem>>, vector<8x384xbf16>
    %cst_101 = arith.constant dense<0.000000e+00> : vector<8x384xf32>
    %79 = tpu.matmul %77, %78, %cst_101 {dimension_numbers = #tpu.dot_dimension_numbers<[1], [0], [0], [1], [0, 0, 1, 1], [], []>} : vector<8x8xbf16>, vector<8x384xbf16>, vector<8x384xf32> -> vector<8x384xf32>
    %c3_102 = arith.constant 3 : index
    %c1_103 = arith.constant 1 : index
    %c0_104 = arith.constant 0 : index
    %c0_105 = arith.constant 0 : index
    %80 = vector.load %arg3[%c3_102, %c1_103, %c0_104, %c0_105] : memref<4x2x8x8xbf16, #tpu.memory_space<vmem>>, vector<1x1x8x8xbf16>
    %81 = vector.shape_cast %80 : vector<1x1x8x8xbf16> to vector<8x8xbf16>
    %c28_106 = arith.constant 28 : index
    %c0_107 = arith.constant 0 : index
    %82 = vector.load %arg6[%c28_106, %c0_107] : memref<36x384xbf16, #tpu.memory_space<vmem>>, vector<8x384xbf16>
    %cst_108 = arith.constant dense<0.000000e+00> : vector<8x384xf32>
    %83 = tpu.matmul %81, %82, %cst_108 {dimension_numbers = #tpu.dot_dimension_numbers<[1], [0], [0], [1], [0, 0, 1, 1], [], []>} : vector<8x8xbf16>, vector<8x384xbf16>, vector<8x384xf32> -> vector<8x384xf32>
    %84 = arith.addf %79, %83 : vector<8x384xf32>
    %85 = vector.broadcast %27 : vector<8x1xf32> to vector<8x384xf32>
    %86 = arith.addf %84, %85 : vector<8x384xf32>
    %cst_109 = arith.constant 0.000000e+00 : f32
    %87 = vector.broadcast %cst_109 : f32 to vector<8x384xf32>
    %88 = arith.maximumf %86, %87 : vector<8x384xf32>
    %c0_110 = arith.constant 0 : index
    %c3_111 = arith.constant 3 : index
    %c0_112 = arith.constant 0 : index
    %c0_113 = arith.constant 0 : index
    %89 = vector.load %arg5[%c0_110, %c3_111, %c0_112, %c0_113] : memref<1x4x8x384xf32, #tpu.memory_space<vmem>>, vector<1x1x8x384xf32>
    %90 = vector.shape_cast %89 : vector<1x1x8x384xf32> to vector<8x384xf32>
    %91 = vector.shape_cast %88 : vector<8x384xf32> to vector<1x1x8x384xf32>
    tpu.vector_store %arg5[%c0_110, %c3_111, %c0_112, %c0_113], %91 {strides = array<i32>} : memref<1x4x8x384xf32, #tpu.memory_space<vmem>>, vector<1x1x8x384xf32>,
    return
  }
  func.func @transform_0(%arg0: i32, %arg1: i32) -> (i32, i32, i32, i32) {
    %c0_i32 = arith.constant 0 : i32
    %c0_i32_0 = arith.constant 0 : i32
    %c0_i32_1 = arith.constant 0 : i32
    return %arg0, %arg1, %c0_i32, %c0_i32_0 : i32, i32, i32, i32
  }
  func.func @transform_1(%arg0: i32, %arg1: i32) -> (i32, i32, i32, i32) {
    %c0_i32 = arith.constant 0 : i32
    %c0_i32_0 = arith.constant 0 : i32
    %c0_i32_1 = arith.constant 0 : i32
    %c0_i32_2 = arith.constant 0 : i32
    %c0_i32_3 = arith.constant 0 : i32
    return %c0_i32, %c0_i32_0, %c0_i32_1, %c0_i32_2 : i32, i32, i32, i32
  }
  func.func @transform_2(%arg0: i32, %arg1: i32) -> (i32, i32) {
    %c0_i32 = arith.constant 0 : i32
    %c0_i32_0 = arith.constant 0 : i32
    %c0_i32_1 = arith.constant 0 : i32
    return %c0_i32, %c0_i32_0 : i32, i32
  }
  func.func @transform_3(%arg0: i32, %arg1: i32) -> (i32, i32, i32, i32) {
    %c0_i32 = arith.constant 0 : i32
    %c0_i32_0 = arith.constant 0 : i32
    %c0_i32_1 = arith.constant 0 : i32
    return %arg0, %c0_i32, %c0_i32_0, %arg1 : i32, i32, i32, i32
  }
}

</mosaic_0001>

<llo_original>
// kernel: _lambda_.1
$region0: #{_lambda_.1}
  #allocation0 [shape = 'u32[]', space=smem, size = 0x4, offset = 0x4, fixed_abs, tag = 'smem constant byte address 0x4 - core index']
  #allocation1 [shape = 'u32[72,128]{1,0:T(1,128)}', space=vmem, size = 0x9000, scoped, tag = 'internal scratch']
  #allocation2 [shape = 'bf16[36,384]{1,0:T(8,128)(2,1)}', space=vmem, size = 0x7800, scoped, tag = 'scratch operand']
  %s0 = inlined_call_operand.vmem [shape: bf16[2,1,4,512], index: 0, kind: input, shape index: {}]
  %s1 = inlined_call_operand.vmem [shape: bf16[4,2,8,8], index: 1, kind: input, shape index: {}]
  %s2 = inlined_call_operand.vmem [shape: f32[8,1], index: 2, kind: input, shape index: {}]
  %s3 = inlined_call_operand.vmem [shape: f32[2,4,8,384], index: 3, kind: output, shape index: {}]
  %s4 = sld [smem:[#allocation0]]
  $region45: #{_lambda_.1} parent=0
    _
  %s6 = ssub.s32 1, %s4
  %s7 = scalar_select 0, %s6, %s4
  loop: start=0, step=1, limit=4
  $region2: #{_lambda_.1} parent=0 // loop_pre_header
    _
  $region3: #{_lambda_.1} parent=0 // loop_header
    %s9 = sphi 0, %s13
    %p10 = scmp.ge.s32.totalorder %s9, 4
    %s16 = sphi 0, %s28
    %s17 = sphi 0, %s24
    %s18 = sphi 0, %s16
    %s19 = sphi 0, %s17
    %s20 = sphi 0, %s18
    %s21 = sphi 0, %s19
    %s33 = sphi 0, %s35
    %s36 = sphi 0, %s33
    %s37 = sphi 0, %s36
    %s53 = sphi 0, %s37
    %s57 = sphi 0, %s57
    %s59 = sphi 0, %s57
    %s60 = sphi 0, %s59
    %s74 = sphi 0, %s60
    %s78 = sphi 0, %s78
    %s80 = sphi 0, %s78
    %s81 = sphi 0, %s80
    %s95 = sphi 0, %s81
    %s103 = sphi 0, %s105
    %s106 = sphi 0, %s103
    %s107 = sphi 0, %s106
    %s123 = sphi 0, %s107
  $region4: #{_lambda_.1} parent=0 // loop_header_branch
    %12 = sbr.rel (%p10) target = $region8
  $region5: #{_lambda_.1} parent=0 // loop_body
    %s14 = ssub.s32 %s9, 1
    %s15 = ssub.s32 %s9, 2
    %s22 = sadd.s32 1, %s17
    %p23 = scmp.ge.s32.totalorder %s22, 1
    %s24 = scalar_select %p23, 0, %s22
    %s25 = sadd.s32 1, %s16
    %s26 = scalar_select %p23, %s25, %s16
    %p27 = scmp.ge.s32.totalorder %s26, 2
    %s28 = scalar_select %p27, 0, %s26
    %s29 = ssub.s32 %s16, %s28
    %s30 = ssub.s32 %s17, %s24
    %s31 = sor.u32 %s29, %s30
    %p32 = scmp.eq.s32.totalorder %s31, 0
    %s34 = sadd.s32 %s33, 1
    %s35 = scalar_select %p32, %s33, %s34
    %p38 = pneg %p32
    %p39 = scmp.eq.s32.totalorder %s9, 1
    %p40 = por %p38, %p39
    %p41 = scmp.ne.s32.totalorder %s33, %s36
    %p42 = scmp.eq.s32.totalorder %s9, 0
    %p43 = por %p41, %p42
    %p44 = scmp.ne.s32.totalorder %s33, %s36
    %p45 = scmp.eq.s32.totalorder %s14, 1
    %p46 = por %p44, %p45
    %p47 = scmp.ne.s32.totalorder %s36, %s37
    %p48 = scmp.eq.s32.totalorder %s14, 0
    %p49 = por %p47, %p48
    %p50 = scmp.ne.s32.totalorder %s36, %s37
    %p51 = scmp.eq.s32.totalorder %s15, 1
    %p52 = por %p50, %p51
    %p54 = scmp.ne.s32.totalorder %s37, %s53
    %p55 = scmp.eq.s32.totalorder %s15, 0
    %p56 = por %p54, %p55
    %s58 = sadd.s32 %s57, 1
    %p61 = scmp.eq.s32.totalorder %s9, 1
    %p62 = scmp.ne.s32.totalorder %s57, %s59
    %p63 = scmp.eq.s32.totalorder %s9, 0
    %p64 = por %p62, %p63
    %p65 = scmp.ne.s32.totalorder %s57, %s59
    %p66 = scmp.eq.s32.totalorder %s14, 1
    %p67 = por %p65, %p66
    %p68 = scmp.ne.s32.totalorder %s59, %s60
    %p69 = scmp.eq.s32.totalorder %s14, 0
    %p70 = por %p68, %p69
    %p71 = scmp.ne.s32.totalorder %s59, %s60
    %p72 = scmp.eq.s32.totalorder %s15, 1
    %p73 = por %p71, %p72
    %p75 = scmp.ne.s32.totalorder %s60, %s74
    %p76 = scmp.eq.s32.totalorder %s15, 0
    %p77 = por %p75, %p76
    %s79 = sadd.s32 %s78, 1
    %p82 = scmp.eq.s32.totalorder %s9, 1
    %p83 = scmp.ne.s32.totalorder %s78, %s80
    %p84 = scmp.eq.s32.totalorder %s9, 0
    %p85 = por %p83, %p84
    %p86 = scmp.ne.s32.totalorder %s78, %s80
    %p87 = scmp.eq.s32.totalorder %s14, 1
    %p88 = por %p86, %p87
    %p89 = scmp.ne.s32.totalorder %s80, %s81
    %p90 = scmp.eq.s32.totalorder %s14, 0
    %p91 = por %p89, %p90
    %p92 = scmp.ne.s32.totalorder %s80, %s81
    %p93 = scmp.eq.s32.totalorder %s15, 1
    %p94 = por %p92, %p93
    %p96 = scmp.ne.s32.totalorder %s81, %s95
    %p97 = scmp.eq.s32.totalorder %s15, 0
    %p98 = por %p96, %p97
    %s99 = ssub.s32 %s16, %s28
    %s100 = ssub.s32 %s17, %s24
    %s101 = sor.u32 %s99, %s100
    %p102 = scmp.eq.s32.totalorder %s101, 0
    %s104 = sadd.s32 %s103, 1
    %s105 = scalar_select %p102, %s103, %s104
    %p108 = pneg %p102
    %p109 = scmp.eq.s32.totalorder %s9, 1
    %p110 = por %p108, %p109
    %p111 = scmp.ne.s32.totalorder %s103, %s106
    %p112 = scmp.eq.s32.totalorder %s9, 0
    %p113 = por %p111, %p112
    %p114 = scmp.ne.s32.totalorder %s103, %s106
    %p115 = scmp.eq.s32.totalorder %s14, 1
    %p116 = por %p114, %p115
    %p117 = scmp.ne.s32.totalorder %s106, %s107
    %p118 = scmp.eq.s32.totalorder %s14, 0
    %p119 = por %p117, %p118
    %p120 = scmp.ne.s32.totalorder %s106, %s107
    %p121 = scmp.eq.s32.totalorder %s15, 1
    %p122 = por %p120, %p121
    %p124 = scmp.ne.s32.totalorder %s107, %s123
    %p125 = scmp.eq.s32.totalorder %s15, 0
    %p126 = por %p124, %p125
    %p127 = scmp.le.s32.totalorder 1, %s9
    %p128 = scmp.lt.s32.totalorder %s9, 3
    %p129 = pnand %p127, %p128
    %p130 = pneg %p129
    // Predicated region
    $region9: #{_lambda_.1} parent=5 // pred_check
      _
    $region10: #{_lambda_.1} parent=5 // pred_check_branch
      %132 = sbr.rel (%p129) target = $region12
    $region11: #{_lambda_.1} parent=5 // pred_region
      %s133 = ssub.s32 %s9, 1
      // Predicated region
      $region13: #{_lambda_.1} parent=11 // pred_check
        %p134 = pneg %p70
      $region14: #{_lambda_.1} parent=11 // pred_check_branch
        %136 = sbr.rel (%p134) target = $region16
      $region15: #{_lambda_.1} parent=11 // pred_region
        _
      $region16: #{_lambda_.1} parent=11 // pred_fallthru
        _
      // Predicated region
      $region17: #{_lambda_.1} parent=11 // pred_check
        %p137 = pneg %p91
      $region18: #{_lambda_.1} parent=11 // pred_check_branch
        %139 = sbr.rel (%p137) target = $region20
      $region19: #{_lambda_.1} parent=11 // pred_region
        _
      $region20: #{_lambda_.1} parent=11 // pred_fallthru
        _
    $region12: #{_lambda_.1} parent=5 // pred_fallthru
      _
    %p140 = scmp.lt.s32.totalorder %s9, 2
    // Predicated region
    $region21: #{_lambda_.1} parent=5 // pred_check
      %p141 = pneg %p140
    $region22: #{_lambda_.1} parent=5 // pred_check_branch
      %143 = sbr.rel (%p141) target = $region24
    $region23: #{_lambda_.1} parent=5 // pred_region
      // Predicated region
      $region25: #{_lambda_.1} parent=23 // pred_check
        %p144 = pneg %p43
      $region26: #{_lambda_.1} parent=23 // pred_check_branch
        %146 = sbr.rel (%p144) target = $region28
      $region27: #{_lambda_.1} parent=23 // pred_region
        %p147 = scmp.lt.s32.totalorder %s16, 1
        %s148 = scalar_select %p147, %s16, 1
        %p149 = scmp.lt.s32.totalorder %s17, 0
        %s150 = scalar_select %p149, %s17, 0
        %s151 = smul.addr %s150, 4
        %s152 = smul.addr %s148, 4
        %s153 = sadd.s32 %s151, %s152
        %s154 = smul.addr %s153, 2
        %s155 = scalar_lea.vmem %s0, %s154
      $region28: #{_lambda_.1} parent=23 // pred_fallthru
        _
    $region24: #{_lambda_.1} parent=5 // pred_fallthru
      _
    %p156 = scmp.le.s32.totalorder 1, %s9
    %p157 = scmp.lt.s32.totalorder %s9, 3
    %p158 = pnand %p156, %p157
    %p159 = pneg %p158
    // Predicated region
    $region29: #{_lambda_.1} parent=5 // pred_check
      _
    $region30: #{_lambda_.1} parent=5 // pred_check_branch
      %161 = sbr.rel (%p158) target = $region32
    $region31: #{_lambda_.1} parent=5 // pred_region
      %s162 = ssub.s32 %s9, 1
      %p163 = scmp.lt.s32.totalorder %s18, 1
      %s164 = scalar_select %p163, %s18, 1
      %p165 = scmp.lt.s32.totalorder %s19, 0
      %s166 = scalar_select %p165, %s19, 0
      %s167 = smul.addr %s166, 4
      %s168 = smul.addr %s164, 4
      %s169 = sadd.s32 %s167, %s168
      %s170 = smul.addr %s169, 2
      %s171 = scalar_lea.vmem %s0, %s170
      %p172 = pneg %p49
      %p173 = pneg %p46
      %p174 = pneg %p70
      %p175 = pneg %p67
      %p176 = pneg %p91
      %p177 = pneg %p88
      %p178 = pneg %p119
      %p179 = pneg %p116
      %s180 = smul.u32 3, %s19
      %p181 = scmp.lt.s32.totalorder %s18, 1
      %s182 = scalar_select %p181, %s18, 1
      %p183 = scmp.lt.s32.totalorder %s180, 2
      %s184 = scalar_select %p183, %s180, 2
      %s185 = smul.addr %s182, 12
      %s186 = sadd.s32 %s184, %s185
      %s187 = smul.addr %s186, 8
      %s188 = scalar_lea.vmem %s3, %s187
      %p189 = scmp.lt.s32.totalorder %s18, 1
      %s190 = scalar_select %p189, %s18, 1
      %p191 = scmp.lt.s32.totalorder %s19, 0
      %s192 = scalar_select %p191, %s19, 0
      %s193 = smul.addr %s192, 4
      %s194 = smul.addr %s190, 4
      %s195 = sadd.s32 %s193, %s194
      %s196 = smul.addr %s195, 2
      %s197 = scalar_lea.vmem %s0, %s196
      %s198 = smul.u32 3, %s19
      %p199 = scmp.lt.s32.totalorder %s18, 1
      %s200 = scalar_select %p199, %s18, 1
      %p201 = scmp.lt.s32.totalorder %s198, 2
      %s202 = scalar_select %p201, %s198, 2
      %s203 = smul.addr %s200, 12
      %s204 = sadd.s32 %s202, %s203
      %s205 = smul.addr %s204, 8
      %s206 = scalar_lea.vmem %s3, %s205
      %s207 = smul.u32 3, %s19
      %v209 = vld [vmem:[%s197] sm:$0x3f]
      %211 = vst [vmem:[#allocation1] ss:$2 sm:$0xff] %v209
      %v212 = vld.sshfl [vmem:[#allocation1] sm:$0xff pattern:$0x75643120]
      %v213 = vld.sshfl [vmem:[#allocation1 + $0x8] sm:$0xff pattern:$0x75643120]
      %216 = vst [vmem:[#allocation2] sm:$0x33] %v212
      %217 = vst [vmem:[#allocation2 + $0x8] sm:$0x3] %v213
      %v218 = vld [vmem:[%s197] sm:$0xff]
      %s220 = scalar_lea.vmem [#allocation1], 1
      %221 = vst [vmem:[%s220] ss:$2 sm:$0xff] %v218
      %v222 = vld.sshfl [vmem:[#allocation1] sm:$0xff pattern:$0x75643120]
      %v224 = vld.sshfl [vmem:[#allocation1 + $0x8] sm:$0xff pattern:$0x75643120]
      %226 = vrot.lane.b32.xlu0 %v222, 127
      %v227 = vpop.permute.xlu0 %226
      %228 = vrot.lane.b32.xlu0 %v224, 127
      %v229 = vpop.permute.xlu0 %228
      %v230 = vrot.slane %v227, 4
      %v231 = vrot.slane %v229, 4
      %vm232 = vcmask 1043456
      %v233 = vsel %vm232, %v230, %v231
      %vm234 = vcmask 1039360
      %v235 = vsel %vm234, %v227, %v233
      %v236 = vsel %vm234, %v229, %v231
      %239 = vst [vmem:[#allocation2] sm:$0xcc] %v235
      %240 = vst [vmem:[#allocation2 + $0x8] sm:$0xc] %v236
      %v241 = vld [vmem:[%s197] sm:$0xff]
      %243 = vst [vmem:[#allocation1] ss:$2 sm:$0xff] %v241
      %v244 = vld.sshfl [vmem:[#allocation1] sm:$0xff pattern:$0x75643120]
      %v246 = vld.sshfl [vmem:[#allocation1 + $0x8] sm:$0xff pattern:$0x75643120]
      %248 = vrot.lane.b32.xlu0 %v244, 126
      %v249 = vpop.permute.xlu0 %248
      %250 = vrot.lane.b32.xlu0 %v246, 126
      %v251 = vpop.permute.xlu0 %250
      %v252 = vrot.slane %v249, 4
      %v253 = vrot.slane %v251, 4
      %v254 = vsel %vm232, %v252, %v253
      %vm255 = vcmask 1031168
      %v256 = vsel %vm255, %v249, %v254
      %v257 = vsel %vm255, %v251, %v253
      %260 = vst [vmem:[#allocation2 + $0xc] sm:$0x33] %v256
      %261 = vst [vmem:[#allocation2 + $0x14] sm:$0x3] %v257
      %v262 = vld [vmem:[%s197] sm:$0xff]
      %s264 = scalar_lea.vmem [#allocation1], 1
      %265 = vst [vmem:[%s264] ss:$2 sm:$0xff] %v262
      %v266 = vld.sshfl [vmem:[#allocation1] sm:$0xff pattern:$0x75643120]
      %v268 = vld.sshfl [vmem:[#allocation1 + $0x8] sm:$0xff pattern:$0x75643120]
      %270 = vrot.lane.b32.xlu0 %v266, 104
      %v271 = vpop.permute.xlu0 %270
      %272 = vrot.lane.b32.xlu0 %v268, 104
      %v273 = vpop.permute.xlu0 %272
      %v274 = vrot.slane %v271, 4
      %v275 = vrot.slane %v273, 4
      %v276 = vsel %vm232, %v274, %v275
      %vm277 = vcmask 850944
      %v278 = vsel %vm277, %v271, %v276
      %v279 = vsel %vm277, %v273, %v275
      %282 = vst [vmem:[#allocation2 + $0xc] sm:$0xcc] %v278
      %283 = vst [vmem:[#allocation2 + $0x14] sm:$0xc] %v279
      %v284 = vld [vmem:[%s197] sm:$0xff]
      %286 = vst [vmem:[#allocation1] ss:$2 sm:$0xff] %v284
      %v287 = vld.sshfl [vmem:[#allocation1] sm:$0xff pattern:$0x75643120]
      %v289 = vld.sshfl [vmem:[#allocation1 + $0x8] sm:$0xff pattern:$0x75643120]
      %291 = vrot.lane.b32.xlu0 %v287, 103
      %v292 = vpop.permute.xlu0 %291
      %293 = vrot.lane.b32.xlu0 %v289, 103
      %v294 = vpop.permute.xlu0 %293
      %v295 = vrot.slane %v292, 4
      %v296 = vrot.slane %v294, 4
      %v297 = vsel %vm232, %v295, %v296
      %vm298 = vcmask 842752
      %v299 = vsel %vm298, %v292, %v297
      %v300 = vsel %vm298, %v294, %v296
      %303 = vst [vmem:[#allocation2 + $0x18] sm:$0x33] %v299
      %304 = vst [vmem:[#allocation2 + $0x20] sm:$0x3] %v300
      %v305 = vld [vmem:[%s197] sm:$0xff]
      %s307 = scalar_lea.vmem [#allocation1], 1
      %308 = vst [vmem:[%s307] ss:$2 sm:$0xff] %v305
      %v309 = vld.sshfl [vmem:[#allocation1] sm:$0xff pattern:$0x75643120]
      %v311 = vld.sshfl [vmem:[#allocation1 + $0x8] sm:$0xff pattern:$0x75643120]
      %313 = vrot.lane.b32.xlu0 %v309, 102
      %v314 = vpop.permute.xlu0 %313
      %315 = vrot.lane.b32.xlu0 %v311, 102
      %v316 = vpop.permute.xlu0 %315
      %v317 = vrot.slane %v314, 4
      %v318 = vrot.slane %v316, 4
      %v319 = vsel %vm232, %v317, %v318
      %vm320 = vcmask 834560
      %v321 = vsel %vm320, %v314, %v319
      %v322 = vsel %vm320, %v316, %v318
      %325 = vst [vmem:[#allocation2 + $0x18] sm:$0xcc] %v321
      %326 = vst [vmem:[#allocation2 + $0x20] sm:$0xc] %v322
      %v327 = vld [vmem:[%s197] sm:$0xff]
      %329 = vst [vmem:[#allocation1] ss:$2 sm:$0xff] %v327
      %v330 = vld.sshfl [vmem:[#allocation1] sm:$0xff pattern:$0x75643120]
      %v332 = vld.sshfl [vmem:[#allocation1 + $0x8] sm:$0xff pattern:$0x75643120]
      %334 = vrot.lane.b32.xlu0 %v330, 80
      %v335 = vpop.permute.xlu0 %334
      %336 = vrot.lane.b32.xlu0 %v332, 80
      %v337 = vpop.permute.xlu0 %336
      %v338 = vrot.slane %v335, 4
      %v339 = vrot.slane %v337, 4
      %v340 = vsel %vm232, %v338, %v339
      %vm341 = vcmask 654336
      %v342 = vsel %vm341, %v335, %v340
      %v343 = vsel %vm341, %v337, %v339
      %346 = vst [vmem:[#allocation2 + $0x24] sm:$0x33] %v342
      %347 = vst [vmem:[#allocation2 + $0x2c] sm:$0x3] %v343
      %v348 = vld [vmem:[%s197] sm:$0xff]
      %s350 = scalar_lea.vmem [#allocation1], 1
      %351 = vst [vmem:[%s350] ss:$2 sm:$0xff] %v348
      %v352 = vld.sshfl [vmem:[#allocation1] sm:$0xff pattern:$0x75643120]
      %v354 = vld.sshfl [vmem:[#allocation1 + $0x8] sm:$0xff pattern:$0x75643120]
      %356 = vrot.lane.b32.xlu0 %v352, 79
      %v357 = vpop.permute.xlu0 %356
      %358 = vrot.lane.b32.xlu0 %v354, 79
      %v359 = vpop.permute.xlu0 %358
      %v360 = vrot.slane %v357, 4
      %v361 = vrot.slane %v359, 4
      %v362 = vsel %vm232, %v360, %v361
      %vm363 = vcmask 646144
      %v364 = vsel %vm363, %v357, %v362
      %v365 = vsel %vm363, %v359, %v361
      %368 = vst [vmem:[#allocation2 + $0x24] sm:$0xcc] %v364
      %369 = vst [vmem:[#allocation2 + $0x2c] sm:$0xc] %v365
      %v370 = vld [vmem:[%s197] sm:$0xff]
      %372 = vst [vmem:[#allocation1] ss:$2 sm:$0xff] %v370
      %v373 = vld.sshfl [vmem:[#allocation1] sm:$0xff pattern:$0x75643120]
      %v375 = vld.sshfl [vmem:[#allocation1 + $0x8] sm:$0xff pattern:$0x75643120]
      %377 = vrot.lane.b32.xlu0 %v373, 78
      %v378 = vpop.permute.xlu0 %377
      %379 = vrot.lane.b32.xlu0 %v375, 78
      %v380 = vpop.permute.xlu0 %379
      %v381 = vrot.slane %v378, 4
      %v382 = vrot.slane %v380, 4
      %v383 = vsel %vm232, %v381, %v382
      %vm384 = vcmask 637952
      %v385 = vsel %vm384, %v378, %v383
      %v386 = vsel %vm384, %v380, %v382
      %389 = vst [vmem:[#allocation2 + $0x30] sm:$0x33] %v385
      %390 = vst [vmem:[#allocation2 + $0x38] sm:$0x3] %v386
      %v391 = vld [vmem:[%s2] sm:$0xff]
      %v392 = vld [vmem:[%s1] sm:$0xf]
      %v393 = vld [vmem:[#allocation2] sm:$0xff]
      %v394 = vld [vmem:[#allocation2 + $0x8] sm:$0xf]
      %s395 = scalar_lea.vmem %s1, 4
      %v396 = vld [vmem:[%s395] sm:$0xf]
      %v397 = vld [vmem:[#allocation2 + $0xc] sm:$0xcc]
      %v398 = vld [vmem:[#allocation2 + $0x14] sm:$0xc]
      %v399 = vld [vmem:[#allocation2 + $0x18] sm:$0x33]
      %v400 = vld [vmem:[#allocation2 + $0x20] sm:$0x3]
      %v405 = vunpack.c.l.b16 %v397
      %v406 = vunpack.c.h.b16 %v397
      %v407 = vunpack.c.l.b16 %v398
      %v408 = vunpack.c.l.b16 %v399
      %v409 = vunpack.c.h.b16 %v399
      %v410 = vunpack.c.l.b16 %v400
      %v411 = vpack.c.b16 %v408, %v405
      %v412 = vpack.c.b16 %v409, %v406
      %v413 = vpack.c.b16 %v410, %v407
      %v414 = vrot.slane %v411, 2
      %v415 = vrot.slane %v412, 2
      %v416 = vrot.slane %v413, 2
      %vm417 = vcmask 64512
      %v419 = vsel %vm417, %v396, 0
      %vm421 = vcmask 1043456
      %v423 = vsel %vm421, %v414, 0
      %v426 = vsel %vm421, %v415, 0
      %v429 = vsel %vm421, %v416, 0
      %431 = vmatpush.bf16.msra.mxu0 0
      %432 = vmatpush.bf16.msra.mxu0 0
      %433 = vmatpush.bf16.msra.mxu0 0
      %434 = vmatpush.bf16.msra.mxu0 0
      %435 = vmatpush.bf16.msra.mxu0 0
      %436 = vmatpush.bf16.msra.mxu0 0
      %437 = vmatpush.bf16.msra.mxu0 0
      %438 = vmatpush.bf16.msra.mxu0 %v423
      %439 = vmatmul.bf16.gmra.mxu0 %v419
      %v440 = vpop.f32.mrf.mxu0
      %v441 = vadd.f32 0.0, %v440
      %v442 = vpop.f32.mrf.mxu0
      %443 = vdwg.mxu0
      %444 = vmatpush.bf16.msra.mxu0 0
      %445 = vmatpush.bf16.msra.mxu0 0
      %446 = vmatpush.bf16.msra.mxu0 0
      %447 = vmatpush.bf16.msra.mxu0 0
      %448 = vmatpush.bf16.msra.mxu0 0
      %449 = vmatpush.bf16.msra.mxu0 0
      %450 = vmatpush.bf16.msra.mxu0 0
      %451 = vmatpush.bf16.msra.mxu0 %v426
      %452 = vmatmul.bf16.gmra.mxu0 %v419
      %v453 = vpop.f32.mrf.mxu0
      %v454 = vadd.f32 0.0, %v453
      %v455 = vpop.f32.mrf.mxu0
      %456 = vdwg.mxu0
      %457 = vmatpush.bf16.msra.mxu0 0
      %458 = vmatpush.bf16.msra.mxu0 0
      %459 = vmatpush.bf16.msra.mxu0 0
      %460 = vmatpush.bf16.msra.mxu0 0
      %461 = vmatpush.bf16.msra.mxu0 0
      %462 = vmatpush.bf16.msra.mxu0 0
      %463 = vmatpush.bf16.msra.mxu0 0
      %464 = vmatpush.bf16.msra.mxu0 %v429
      %465 = vmatmul.bf16.gmra.mxu0 %v419
      %v466 = vpop.f32.mrf.mxu0
      %v467 = vadd.f32 0.0, %v466
      %v468 = vpop.f32.mrf.mxu0
      %469 = vdwg.mxu0
      %v472 = vunpack.c.l.b16 %v393
      %v473 = vunpack.c.h.b16 %v393
      %v474 = vunpack.c.l.b16 %v394
      %v475 = vpack.c.b16 %v472, %v472
      %v476 = vpack.c.b16 %v473, %v473
      %v477 = vpack.c.b16 %v474, %v474
      %v479 = vsel %vm417, %v392, 0
      %v482 = vsel %vm421, %v475, 0
      %v485 = vsel %vm421, %v476, 0
      %v488 = vsel %vm421, %v477, 0
      %490 = vmatpush.bf16.msra.mxu0 0
      %491 = vmatpush.bf16.msra.mxu0 0
      %492 = vmatpush.bf16.msra.mxu0 0
      %493 = vmatpush.bf16.msra.mxu0 0
      %494 = vmatpush.bf16.msra.mxu0 0
      %495 = vmatpush.bf16.msra.mxu0 0
      %496 = vmatpush.bf16.msra.mxu0 0
      %497 = vmatpush.bf16.msra.mxu0 %v482
      %498 = vmatmul.bf16.gmra.mxu0 %v479
      %v499 = vpop.f32.mrf.mxu0
      %v500 = vadd.f32 %v441, %v499
      %v501 = vpop.f32.mrf.mxu0
      %502 = vdwg.mxu0
      %503 = vmatpush.bf16.msra.mxu0 0
      %504 = vmatpush.bf16.msra.mxu0 0
      %505 = vmatpush.bf16.msra.mxu0 0
      %506 = vmatpush.bf16.msra.mxu0 0
      %507 = vmatpush.bf16.msra.mxu0 0
      %508 = vmatpush.bf16.msra.mxu0 0
      %509 = vmatpush.bf16.msra.mxu0 0
      %510 = vmatpush.bf16.msra.mxu0 %v485
      %511 = vmatmul.bf16.gmra.mxu0 %v479
      %v512 = vpop.f32.mrf.mxu0
      %v513 = vadd.f32 %v454, %v512
      %v514 = vpop.f32.mrf.mxu0
      %515 = vdwg.mxu0
      %516 = vmatpush.bf16.msra.mxu0 0
      %517 = vmatpush.bf16.msra.mxu0 0
      %518 = vmatpush.bf16.msra.mxu0 0
      %519 = vmatpush.bf16.msra.mxu0 0
      %520 = vmatpush.bf16.msra.mxu0 0
      %521 = vmatpush.bf16.msra.mxu0 0
      %522 = vmatpush.bf16.msra.mxu0 0
      %523 = vmatpush.bf16.msra.mxu0 %v488
      %524 = vmatmul.bf16.gmra.mxu0 %v479
      %v525 = vpop.f32.mrf.mxu0
      %v526 = vadd.f32 %v467, %v525
      %v527 = vpop.f32.mrf.mxu0
      %528 = vdwg.mxu0
      %530 = vset.pattern.permute.xlu0 0
      %531 = vperm.xlu0 %530, %v391
      %v532 = vpop.permute.xlu0 %531
      %v534 = vadd.f32 %v500, %v532
      %v535 = vadd.f32 %v513, %v532
      %v536 = vadd.f32 %v526, %v532
      %v537 = vmax.f32 %v534, 0.0
      %v538 = vmax.f32 %v535, 0.0
      %v539 = vmax.f32 %v536, 0.0
      %540 = vst [vmem:[%s206] sm:$0xff] %v537
      %541 = vst [vmem:[%s206 + $0x8] sm:$0xff] %v538
      %542 = vst [vmem:[%s206 + $0x10] sm:$0xff] %v539
      %s543 = scalar_lea.vmem %s1, 8
      %v544 = vld [vmem:[%s543] sm:$0xf]
      %v545 = vld [vmem:[#allocation2] sm:$0xcc]
      %v546 = vld [vmem:[#allocation2 + $0x8] sm:$0xc]
      %v547 = vld [vmem:[#allocation2 + $0xc] sm:$0x33]
      %v548 = vld [vmem:[#allocation2 + $0x14] sm:$0x3]
      %s549 = scalar_lea.vmem %s1, 12
      %v550 = vld [vmem:[%s549] sm:$0xf]
      %v551 = vld [vmem:[#allocation2 + $0x18] sm:$0xff]
      %v552 = vld [vmem:[#allocation2 + $0x20] sm:$0xf]
      %v555 = vunpack.c.l.b16 %v551
      %v556 = vunpack.c.h.b16 %v551
      %v557 = vunpack.c.l.b16 %v552
      %v558 = vpack.c.b16 %v555, %v555
      %v559 = vpack.c.b16 %v556, %v556
      %v560 = vpack.c.b16 %v557, %v557
      %v562 = vsel %vm417, %v550, 0
      %v565 = vsel %vm421, %v558, 0
      %v568 = vsel %vm421, %v559, 0
      %v571 = vsel %vm421, %v560, 0
      %573 = vmatpush.bf16.msra.mxu0 0
      %574 = vmatpush.bf16.msra.mxu0 0
      %575 = vmatpush.bf16.msra.mxu0 0
      %576 = vmatpush.bf16.msra.mxu0 0
      %577 = vmatpush.bf16.msra.mxu0 0
      %578 = vmatpush.bf16.msra.mxu0 0
      %579 = vmatpush.bf16.msra.mxu0 0
      %580 = vmatpush.bf16.msra.mxu0 %v565
      %581 = vmatmul.bf16.gmra.mxu0 %v562
      %v582 = vpop.f32.mrf.mxu0
      %v583 = vadd.f32 0.0, %v582
      %v584 = vpop.f32.mrf.mxu0
      %585 = vdwg.mxu0
      %586 = vmatpush.bf16.msra.mxu0 0
      %587 = vmatpush.bf16.msra.mxu0 0
      %588 = vmatpush.bf16.msra.mxu0 0
      %589 = vmatpush.bf16.msra.mxu0 0
      %590 = vmatpush.bf16.msra.mxu0 0
      %591 = vmatpush.bf16.msra.mxu0 0
      %592 = vmatpush.bf16.msra.mxu0 0
      %593 = vmatpush.bf16.msra.mxu0 %v568
      %594 = vmatmul.bf16.gmra.mxu0 %v562
      %v595 = vpop.f32.mrf.mxu0
      %v596 = vadd.f32 0.0, %v595
      %v597 = vpop.f32.mrf.mxu0
      %598 = vdwg.mxu0
      %599 = vmatpush.bf16.msra.mxu0 0
      %600 = vmatpush.bf16.msra.mxu0 0
      %601 = vmatpush.bf16.msra.mxu0 0
      %602 = vmatpush.bf16.msra.mxu0 0
      %603 = vmatpush.bf16.msra.mxu0 0
      %604 = vmatpush.bf16.msra.mxu0 0
      %605 = vmatpush.bf16.msra.mxu0 0
      %606 = vmatpush.bf16.msra.mxu0 %v571
      %607 = vmatmul.bf16.gmra.mxu0 %v562
      %v608 = vpop.f32.mrf.mxu0
      %v609 = vadd.f32 0.0, %v608
      %v610 = vpop.f32.mrf.mxu0
      %611 = vdwg.mxu0
      %v616 = vunpack.c.l.b16 %v545
      %v617 = vunpack.c.h.b16 %v545
      %v618 = vunpack.c.l.b16 %v546
      %v619 = vunpack.c.l.b16 %v547
      %v620 = vunpack.c.h.b16 %v547
      %v621 = vunpack.c.l.b16 %v548
      %v622 = vpack.c.b16 %v619, %v616
      %v623 = vpack.c.b16 %v620, %v617
      %v624 = vpack.c.b16 %v621, %v618
      %v625 = vrot.slane %v622, 2
      %v626 = vrot.slane %v623, 2
      %v627 = vrot.slane %v624, 2
      %v629 = vsel %vm417, %v544, 0
      %v632 = vsel %vm421, %v625, 0
      %v635 = vsel %vm421, %v626, 0
      %v638 = vsel %vm421, %v627, 0
      %640 = vmatpush.bf16.msra.mxu0 0
      %641 = vmatpush.bf16.msra.mxu0 0
      %642 = vmatpush.bf16.msra.mxu0 0
      %643 = vmatpush.bf16.msra.mxu0 0
      %644 = vmatpush.bf16.msra.mxu0 0
      %645 = vmatpush.bf16.msra.mxu0 0
      %646 = vmatpush.bf16.msra.mxu0 0
      %647 = vmatpush.bf16.msra.mxu0 %v632
      %648 = vmatmul.bf16.gmra.mxu0 %v629
      %v649 = vpop.f32.mrf.mxu0
      %v650 = vadd.f32 %v583, %v649
      %v651 = vpop.f32.mrf.mxu0
      %652 = vdwg.mxu0
      %653 = vmatpush.bf16.msra.mxu0 0
      %654 = vmatpush.bf16.msra.mxu0 0
      %655 = vmatpush.bf16.msra.mxu0 0
      %656 = vmatpush.bf16.msra.mxu0 0
      %657 = vmatpush.bf16.msra.mxu0 0
      %658 = vmatpush.bf16.msra.mxu0 0
      %659 = vmatpush.bf16.msra.mxu0 0
      %660 = vmatpush.bf16.msra.mxu0 %v635
      %661 = vmatmul.bf16.gmra.mxu0 %v629
      %v662 = vpop.f32.mrf.mxu0
      %v663 = vadd.f32 %v596, %v662
      %v664 = vpop.f32.mrf.mxu0
      %665 = vdwg.mxu0
      %666 = vmatpush.bf16.msra.mxu0 0
      %667 = vmatpush.bf16.msra.mxu0 0
      %668 = vmatpush.bf16.msra.mxu0 0
      %669 = vmatpush.bf16.msra.mxu0 0
      %670 = vmatpush.bf16.msra.mxu0 0
      %671 = vmatpush.bf16.msra.mxu0 0
      %672 = vmatpush.bf16.msra.mxu0 0
      %673 = vmatpush.bf16.msra.mxu0 %v638
      %674 = vmatmul.bf16.gmra.mxu0 %v629
      %v675 = vpop.f32.mrf.mxu0
      %v676 = vadd.f32 %v609, %v675
      %v677 = vpop.f32.mrf.mxu0
      %678 = vdwg.mxu0
      %v679 = vadd.f32 %v650, %v532
      %v680 = vadd.f32 %v663, %v532
      %v681 = vadd.f32 %v676, %v532
      %v682 = vmax.f32 %v679, 0.0
      %v683 = vmax.f32 %v680, 0.0
      %v684 = vmax.f32 %v681, 0.0
      %s685 = scalar_lea.vmem %s206, 24
      %686 = vst [vmem:[%s685] sm:$0xff] %v682
      %687 = vst [vmem:[%s685 + $0x8] sm:$0xff] %v683
      %688 = vst [vmem:[%s685 + $0x10] sm:$0xff] %v684
      %s689 = scalar_lea.vmem %s1, 16
      %v690 = vld [vmem:[%s689] sm:$0xf]
      %v691 = vld [vmem:[#allocation2 + $0xc] sm:$0xcc]
      %v692 = vld [vmem:[#allocation2 + $0x14] sm:$0xc]
      %v693 = vld [vmem:[#allocation2 + $0x18] sm:$0x33]
      %v694 = vld [vmem:[#allocation2 + $0x20] sm:$0x3]
      %s695 = scalar_lea.vmem %s1, 20
      %v696 = vld [vmem:[%s695] sm:$0xf]
      %v697 = vld [vmem:[#allocation2 + $0x24] sm:$0xff]
      %v698 = vld [vmem:[#allocation2 + $0x2c] sm:$0xf]
      %v701 = vunpack.c.l.b16 %v697
      %v702 = vunpack.c.h.b16 %v697
      %v703 = vunpack.c.l.b16 %v698
      %v704 = vpack.c.b16 %v701, %v701
      %v705 = vpack.c.b16 %v702, %v702
      %v706 = vpack.c.b16 %v703, %v703
      %v708 = vsel %vm417, %v696, 0
      %v711 = vsel %vm421, %v704, 0
      %v714 = vsel %vm421, %v705, 0
      %v717 = vsel %vm421, %v706, 0
      %719 = vmatpush.bf16.msra.mxu0 0
      %720 = vmatpush.bf16.msra.mxu0 0
      %721 = vmatpush.bf16.msra.mxu0 0
      %722 = vmatpush.bf16.msra.mxu0 0
      %723 = vmatpush.bf16.msra.mxu0 0
      %724 = vmatpush.bf16.msra.mxu0 0
      %725 = vmatpush.bf16.msra.mxu0 0
      %726 = vmatpush.bf16.msra.mxu0 %v711
      %727 = vmatmul.bf16.gmra.mxu0 %v708
      %v728 = vpop.f32.mrf.mxu0
      %v729 = vadd.f32 0.0, %v728
      %v730 = vpop.f32.mrf.mxu0
      %731 = vdwg.mxu0
      %732 = vmatpush.bf16.msra.mxu0 0
      %733 = vmatpush.bf16.msra.mxu0 0
      %734 = vmatpush.bf16.msra.mxu0 0
      %735 = vmatpush.bf16.msra.mxu0 0
      %736 = vmatpush.bf16.msra.mxu0 0
      %737 = vmatpush.bf16.msra.mxu0 0
      %738 = vmatpush.bf16.msra.mxu0 0
      %739 = vmatpush.bf16.msra.mxu0 %v714
      %740 = vmatmul.bf16.gmra.mxu0 %v708
      %v741 = vpop.f32.mrf.mxu0
      %v742 = vadd.f32 0.0, %v741
      %v743 = vpop.f32.mrf.mxu0
      %744 = vdwg.mxu0
      %745 = vmatpush.bf16.msra.mxu0 0
      %746 = vmatpush.bf16.msra.mxu0 0
      %747 = vmatpush.bf16.msra.mxu0 0
      %748 = vmatpush.bf16.msra.mxu0 0
      %749 = vmatpush.bf16.msra.mxu0 0
      %750 = vmatpush.bf16.msra.mxu0 0
      %751 = vmatpush.bf16.msra.mxu0 0
      %752 = vmatpush.bf16.msra.mxu0 %v717
      %753 = vmatmul.bf16.gmra.mxu0 %v708
      %v754 = vpop.f32.mrf.mxu0
      %v755 = vadd.f32 0.0, %v754
      %v756 = vpop.f32.mrf.mxu0
      %757 = vdwg.mxu0
      %v762 = vunpack.c.l.b16 %v691
      %v763 = vunpack.c.h.b16 %v691
      %v764 = vunpack.c.l.b16 %v692
      %v765 = vunpack.c.l.b16 %v693
      %v766 = vunpack.c.h.b16 %v693
      %v767 = vunpack.c.l.b16 %v694
      %v768 = vpack.c.b16 %v765, %v762
      %v769 = vpack.c.b16 %v766, %v763
      %v770 = vpack.c.b16 %v767, %v764
      %v771 = vrot.slane %v768, 2
      %v772 = vrot.slane %v769, 2
      %v773 = vrot.slane %v770, 2
      %v775 = vsel %vm417, %v690, 0
      %v778 = vsel %vm421, %v771, 0
      %v781 = vsel %vm421, %v772, 0
      %v784 = vsel %vm421, %v773, 0
      %786 = vmatpush.bf16.msra.mxu0 0
      %787 = vmatpush.bf16.msra.mxu0 0
      %788 = vmatpush.bf16.msra.mxu0 0
      %789 = vmatpush.bf16.msra.mxu0 0
      %790 = vmatpush.bf16.msra.mxu0 0
      %791 = vmatpush.bf16.msra.mxu0 0
      %792 = vmatpush.bf16.msra.mxu0 0
      %793 = vmatpush.bf16.msra.mxu0 %v778
      %794 = vmatmul.bf16.gmra.mxu0 %v775
      %v795 = vpop.f32.mrf.mxu0
      %v796 = vadd.f32 %v729, %v795
      %v797 = vpop.f32.mrf.mxu0
      %798 = vdwg.mxu0
      %799 = vmatpush.bf16.msra.mxu0 0
      %800 = vmatpush.bf16.msra.mxu0 0
      %801 = vmatpush.bf16.msra.mxu0 0
      %802 = vmatpush.bf16.msra.mxu0 0
      %803 = vmatpush.bf16.msra.mxu0 0
      %804 = vmatpush.bf16.msra.mxu0 0
      %805 = vmatpush.bf16.msra.mxu0 0
      %806 = vmatpush.bf16.msra.mxu0 %v781
      %807 = vmatmul.bf16.gmra.mxu0 %v775
      %v808 = vpop.f32.mrf.mxu0
      %v809 = vadd.f32 %v742, %v808
      %v810 = vpop.f32.mrf.mxu0
      %811 = vdwg.mxu0
      %812 = vmatpush.bf16.msra.mxu0 0
      %813 = vmatpush.bf16.msra.mxu0 0
      %814 = vmatpush.bf16.msra.mxu0 0
      %815 = vmatpush.bf16.msra.mxu0 0
      %816 = vmatpush.bf16.msra.mxu0 0
      %817 = vmatpush.bf16.msra.mxu0 0
      %818 = vmatpush.bf16.msra.mxu0 0
      %819 = vmatpush.bf16.msra.mxu0 %v784
      %820 = vmatmul.bf16.gmra.mxu0 %v775
      %v821 = vpop.f32.mrf.mxu0
      %v822 = vadd.f32 %v755, %v821
      %v823 = vpop.f32.mrf.mxu0
      %824 = vdwg.mxu0
      %v825 = vadd.f32 %v796, %v532
      %v826 = vadd.f32 %v809, %v532
      %v827 = vadd.f32 %v822, %v532
      %v828 = vmax.f32 %v825, 0.0
      %v829 = vmax.f32 %v826, 0.0
      %v830 = vmax.f32 %v827, 0.0
      %s831 = scalar_lea.vmem %s206, 48
      %832 = vst [vmem:[%s831] sm:$0xff] %v828
      %833 = vst [vmem:[%s831 + $0x8] sm:$0xff] %v829
      %834 = vst [vmem:[%s831 + $0x10] sm:$0xff] %v830
      %s835 = scalar_lea.vmem %s1, 24
      %v836 = vld [vmem:[%s835] sm:$0xf]
      %v837 = vld [vmem:[#allocation2 + $0x18] sm:$0xff]
      %v838 = vld [vmem:[#allocation2 + $0x20] sm:$0xf]
      %s839 = scalar_lea.vmem %s1, 28
      %v840 = vld [vmem:[%s839] sm:$0xf]
      %v841 = vld [vmem:[#allocation2 + $0x24] sm:$0xcc]
      %v842 = vld [vmem:[#allocation2 + $0x2c] sm:$0xc]
      %v843 = vld [vmem:[#allocation2 + $0x30] sm:$0x33]
      %v844 = vld [vmem:[#allocation2 + $0x38] sm:$0x3]
      %v849 = vunpack.c.l.b16 %v841
      %v850 = vunpack.c.h.b16 %v841
      %v851 = vunpack.c.l.b16 %v842
      %v852 = vunpack.c.l.b16 %v843
      %v853 = vunpack.c.h.b16 %v843
      %v854 = vunpack.c.l.b16 %v844
      %v855 = vpack.c.b16 %v852, %v849
      %v856 = vpack.c.b16 %v853, %v850
      %v857 = vpack.c.b16 %v854, %v851
      %v858 = vrot.slane %v855, 2
      %v859 = vrot.slane %v856, 2
      %v860 = vrot.slane %v857, 2
      %v862 = vsel %vm417, %v840, 0
      %v865 = vsel %vm421, %v858, 0
      %v868 = vsel %vm421, %v859, 0
      %v871 = vsel %vm421, %v860, 0
      %873 = vmatpush.bf16.msra.mxu0 0
      %874 = vmatpush.bf16.msra.mxu0 0
      %875 = vmatpush.bf16.msra.mxu0 0
      %876 = vmatpush.bf16.msra.mxu0 0
      %877 = vmatpush.bf16.msra.mxu0 0
      %878 = vmatpush.bf16.msra.mxu0 0
      %879 = vmatpush.bf16.msra.mxu0 0
      %880 = vmatpush.bf16.msra.mxu0 %v865
      %881 = vmatmul.bf16.gmra.mxu0 %v862
      %v882 = vpop.f32.mrf.mxu0
      %v883 = vadd.f32 0.0, %v882
      %v884 = vpop.f32.mrf.mxu0
      %885 = vdwg.mxu0
      %886 = vmatpush.bf16.msra.mxu0 0
      %887 = vmatpush.bf16.msra.mxu0 0
      %888 = vmatpush.bf16.msra.mxu0 0
      %889 = vmatpush.bf16.msra.mxu0 0
      %890 = vmatpush.bf16.msra.mxu0 0
      %891 = vmatpush.bf16.msra.mxu0 0
      %892 = vmatpush.bf16.msra.mxu0 0
      %893 = vmatpush.bf16.msra.mxu0 %v868
      %894 = vmatmul.bf16.gmra.mxu0 %v862
      %v895 = vpop.f32.mrf.mxu0
      %v896 = vadd.f32 0.0, %v895
      %v897 = vpop.f32.mrf.mxu0
      %898 = vdwg.mxu0
      %899 = vmatpush.bf16.msra.mxu0 0
      %900 = vmatpush.bf16.msra.mxu0 0
      %901 = vmatpush.bf16.msra.mxu0 0
      %902 = vmatpush.bf16.msra.mxu0 0
      %903 = vmatpush.bf16.msra.mxu0 0
      %904 = vmatpush.bf16.msra.mxu0 0
      %905 = vmatpush.bf16.msra.mxu0 0
      %906 = vmatpush.bf16.msra.mxu0 %v871
      %907 = vmatmul.bf16.gmra.mxu0 %v862
      %v908 = vpop.f32.mrf.mxu0
      %v909 = vadd.f32 0.0, %v908
      %v910 = vpop.f32.mrf.mxu0
      %911 = vdwg.mxu0
      %v914 = vunpack.c.l.b16 %v837
      %v915 = vunpack.c.h.b16 %v837
      %v916 = vunpack.c.l.b16 %v838
      %v917 = vpack.c.b16 %v914, %v914
      %v918 = vpack.c.b16 %v915, %v915
      %v919 = vpack.c.b16 %v916, %v916
      %v921 = vsel %vm417, %v836, 0
      %v924 = vsel %vm421, %v917, 0
      %v927 = vsel %vm421, %v918, 0
      %v930 = vsel %vm421, %v919, 0
      %932 = vmatpush.bf16.msra.mxu0 0
      %933 = vmatpush.bf16.msra.mxu0 0
      %934 = vmatpush.bf16.msra.mxu0 0
      %935 = vmatpush.bf16.msra.mxu0 0
      %936 = vmatpush.bf16.msra.mxu0 0
      %937 = vmatpush.bf16.msra.mxu0 0
      %938 = vmatpush.bf16.msra.mxu0 0
      %939 = vmatpush.bf16.msra.mxu0 %v924
      %940 = vmatmul.bf16.gmra.mxu0 %v921
      %v941 = vpop.f32.mrf.mxu0
      %v942 = vadd.f32 %v883, %v941
      %v943 = vpop.f32.mrf.mxu0
      %944 = vdwg.mxu0
      %945 = vmatpush.bf16.msra.mxu0 0
      %946 = vmatpush.bf16.msra.mxu0 0
      %947 = vmatpush.bf16.msra.mxu0 0
      %948 = vmatpush.bf16.msra.mxu0 0
      %949 = vmatpush.bf16.msra.mxu0 0
      %950 = vmatpush.bf16.msra.mxu0 0
      %951 = vmatpush.bf16.msra.mxu0 0
      %952 = vmatpush.bf16.msra.mxu0 %v927
      %953 = vmatmul.bf16.gmra.mxu0 %v921
      %v954 = vpop.f32.mrf.mxu0
      %v955 = vadd.f32 %v896, %v954
      %v956 = vpop.f32.mrf.mxu0
      %957 = vdwg.mxu0
      %958 = vmatpush.bf16.msra.mxu0 0
      %959 = vmatpush.bf16.msra.mxu0 0
      %960 = vmatpush.bf16.msra.mxu0 0
      %961 = vmatpush.bf16.msra.mxu0 0
      %962 = vmatpush.bf16.msra.mxu0 0
      %963 = vmatpush.bf16.msra.mxu0 0
      %964 = vmatpush.bf16.msra.mxu0 0
      %965 = vmatpush.bf16.msra.mxu0 %v930
      %966 = vmatmul.bf16.gmra.mxu0 %v921
      %v967 = vpop.f32.mrf.mxu0
      %v968 = vadd.f32 %v909, %v967
      %v969 = vpop.f32.mrf.mxu0
      %970 = vdwg.mxu0
      %v971 = vadd.f32 %v942, %v532
      %v972 = vadd.f32 %v955, %v532
      %v973 = vadd.f32 %v968, %v532
      %v974 = vmax.f32 %v971, 0.0
      %v975 = vmax.f32 %v972, 0.0
      %v976 = vmax.f32 %v973, 0.0
      %s977 = scalar_lea.vmem %s206, 72
      %978 = vst [vmem:[%s977] sm:$0xff] %v974
      %979 = vst [vmem:[%s977 + $0x8] sm:$0xff] %v975
      %980 = vst [vmem:[%s977 + $0x10] sm:$0xff] %v976
      %s981 = smul.u32 3, %s19
      %p982 = scmp.lt.s32.totalorder %s18, 1
      %s983 = scalar_select %p982, %s18, 1
      %p984 = scmp.lt.s32.totalorder %s981, 2
      %s985 = scalar_select %p984, %s981, 2
      %s986 = smul.addr %s983, 12
      %s987 = sadd.s32 %s985, %s986
      %s988 = smul.addr %s987, 8
      %s989 = scalar_lea.vmem %s3, %s988
      // Predicated region
      $region33: #{_lambda_.1} parent=31 // pred_check
        %p990 = pneg %p116
      $region34: #{_lambda_.1} parent=31 // pred_check_branch
        %992 = sbr.rel (%p990) target = $region36
      $region35: #{_lambda_.1} parent=31 // pred_region
        %s993 = smul.u32 3, %s19
      $region36: #{_lambda_.1} parent=31 // pred_fallthru
        _
    $region32: #{_lambda_.1} parent=5 // pred_fallthru
      _
    %p994 = scmp.le.s32.totalorder 2, %s9
    // Predicated region
    $region37: #{_lambda_.1} parent=5 // pred_check
      %p995 = pneg %p994
    $region38: #{_lambda_.1} parent=5 // pred_check_branch
      %997 = sbr.rel (%p995) target = $region40
    $region39: #{_lambda_.1} parent=5 // pred_region
      %s998 = ssub.s32 %s9, 2
      // Predicated region
      $region41: #{_lambda_.1} parent=39 // pred_check
        %p999 = pneg %p122
      $region42: #{_lambda_.1} parent=39 // pred_check_branch
        %1001 = sbr.rel (%p999) target = $region44
      $region43: #{_lambda_.1} parent=39 // pred_region
        %s1002 = smul.u32 3, %s21
        %p1003 = scmp.lt.s32.totalorder %s20, 1
        %s1004 = scalar_select %p1003, %s20, 1
        %p1005 = scmp.lt.s32.totalorder %s1002, 2
        %s1006 = scalar_select %p1005, %s1002, 2
        %s1007 = smul.addr %s1004, 12
        %s1008 = sadd.s32 %s1006, %s1007
        %s1009 = smul.addr %s1008, 8
        %s1010 = scalar_lea.vmem %s3, %s1009
      $region44: #{_lambda_.1} parent=39 // pred_fallthru
        _
    $region40: #{_lambda_.1} parent=5 // pred_fallthru
      _
  $region6: #{_lambda_.1} parent=0 // loop_footer
    %s13 = sadd.s32 1, %s9
  $region7: #{_lambda_.1} parent=0 // loop_footer_branch
    %8 = sbr.rel target = $region3
  $region8: #{_lambda_.1} parent=0 // loop_exit
    _

</llo_original>
